<compile_context>
chip_gen: v5e
topology: v5e:2x2
jax: 0.10.0
libtpu: 0.0.40
codegen_flags: <defaults>
</compile_context>

<pallas_src>
import jax
import jax.numpy as jnp
from jax.experimental import pallas as pl
from jax.experimental.pallas import tpu as pltpu

NEG_SLOPE = 0.01  # torch.nn.LeakyReLU default negative_slope


def _leaky_relu(x):
    return jnp.where(x > 0, x, NEG_SLOPE * x)


def output_pmlp_kernel(x_ref, m_ref,
                       w1_ref, b1_ref, w2_ref, b2_ref,
                       w3_ref, b3_ref, w4_ref, b4_ref,
                       out_ref):
    # x_ref : (1, BT*N, F)   flattened (batch-tile * atoms, 2*num_scalars)
    # m_ref : (1, BT*N, 1)   float mask (0./1.) as a per-row column
    # out   : (1, BT)        one lane-dense row per program
    rows = x_ref.shape[1]
    bt = out_ref.shape[-1]
    n_atoms = rows // bt
    mm_dtype = w1_ref.dtype              # matmul operand dtype (f32 or bf16)

    x = x_ref[0]                                                      # (rows, F)

    # ---- mlp1: Linear(F -> LW) -> LeakyReLU -> Linear(LW -> Mp) ----
    h = jnp.dot(x, w1_ref[...], preferred_element_type=jnp.float32) + b1_ref[...]
    h = _leaky_relu(h)                                                # f32 activations
    h = jnp.dot(h.astype(mm_dtype), w2_ref[...],
                preferred_element_type=jnp.float32) + b2_ref[...]     # (rows, Mp)

    # ---- masked atom-sum, linear cost: per-row select + grouped reduce ----
    m_col = m_ref[0]                                                  # (rows, 1)
    hm = jnp.where(m_col != 0.0, h, 0.0)                              # (rows, Mp)
    mixed = hm.shape[-1]
    s = hm.reshape(bt, n_atoms, mixed).sum(axis=1)                    # (bt, Mp)

    # ---- mlp2: Linear(Mp -> LW) -> LeakyReLU -> Linear(LW -> 1) ----
    g = jnp.dot(s.astype(mm_dtype), w3_ref[...],
                preferred_element_type=jnp.float32) + b3_ref[...]     # (bt, LW)
    g = _leaky_relu(g)
    # final layer as VPU multiply + lane reduction (w4 passed as a (1, LW) row)
    p = jnp.sum(g * w4_ref[...].astype(jnp.float32), axis=-1)         # (bt,)

    out_ref[...] = p.reshape(1, bt) + b4_ref[...]                     # (1, bt)


def _choose_bt(B, N, target_rows):
    """Pick the batch-tile size (number of batch elements per grid step)."""
    # Truly tiny problems: one program, no grid overhead.
    if B * N <= min(1024, target_rows):
        return B
    bt = max(1, min(B, target_rows // max(N, 1)))
    if bt >= 128:
        bt = (bt // 128) * 128            # lane-dense output blocks
    if bt >= B:
        # Avoid collapsing medium/large B into a single grid step: keep >=2
        # steps so dimension_semantics=("parallel",) can use both v7x
        # TensorCores, as long as each output block stays lane-dense (>=128).
        if B >= 256:
            half = -(-B // 2)
            bt = -(-half // 128) * 128
        else:
            bt = B
    return bt


def output_pmlp(scalars, mask, params, *, target_rows=2048,
                compute_dtype=jnp.bfloat16):
    """scalars: (B, N, num_scalars, 2); mask: (B, N) bool -> (B,) float32."""
    B, N, S, two = scalars.shape
    assert two == 2
    F = 2 * S

    w1, b1, w2, b2, w3, b3, w4, b4 = [p.astype(jnp.float32) for p in params]
    LW = w1.shape[1]                       # layer_width
    M0 = w2.shape[1]                       # num_mixed
    Mp = -(-M0 // 128) * 128               # pad num_mixed to lane-dense width

    # Exact zero-padding of the mixed dimension (padded w2 cols / b2 entries /
    # w3 rows are zero, so results are bit-for-bit equivalent math).
    if Mp != M0:
        w2 = jnp.pad(w2, ((0, 0), (0, Mp - M0)))
        b2 = jnp.pad(b2, ((0, 0), (0, Mp - M0)))
        w3 = jnp.pad(w3, ((0, Mp - M0), (0, 0)))
    w4_row = w4.reshape(1, LW)             # final Linear applied as mul+reduce

    # ---- batch tiling ----
    bt = _choose_bt(B, N, target_rows)
    nb = -(-B // bt)
    Bp = nb * bt

    x = scalars.reshape(B, N, F).astype(jnp.float32)
    m = mask.astype(jnp.float32)
    if Bp != B:                             # pad; padded rows are sliced off below
        x = jnp.pad(x, ((0, Bp - B), (0, 0), (0, 0)))
        m = jnp.pad(m, ((0, Bp - B), (0, 0)))
    # Pre-flatten so each program sees a row-dense (BT*N, F) slab and a
    # per-row (BT*N, 1) mask column (no in-kernel relayout of the mask).
    x = x.reshape(nb, bt * N, F)
    m = m.reshape(nb, bt * N, 1)

    # bf16 matmul operands (f32 accumulation / activations / biases / mask).
    if compute_dtype != jnp.float32:
        x = x.astype(compute_dtype)
        w1 = w1.astype(compute_dtype)
        w2 = w2.astype(compute_dtype)
        w3 = w3.astype(compute_dtype)
        w4_row = w4_row.astype(compute_dtype)

    rows_total = Bp * N
    flops = int(2 * rows_total * (F * LW + LW * Mp)      # mlp1
                + 2 * rows_total * Mp                    # masked select + grouped sum
                + 2 * Bp * (Mp * LW + LW))               # mlp2
    bytes_accessed = int(
        x.size * x.dtype.itemsize + m.size * m.dtype.itemsize
        + sum(int(a.size) * a.dtype.itemsize
              for a in (w1, b1, w2, b2, w3, b3, w4_row, b4))
        + Bp * 4)
    cost = pl.CostEstimate(flops=flops, transcendentals=0,
                           bytes_accessed=bytes_accessed)

    def _w_spec(shape):
        return pl.BlockSpec(shape, lambda b: (0, 0))

    out = pl.pallas_call(
        output_pmlp_kernel,
        out_shape=jax.ShapeDtypeStruct((nb, bt), jnp.float32),
        grid=(nb,),
        in_specs=[
            pl.BlockSpec((1, bt * N, F), lambda b: (b, 0, 0)),   # scalars block
            pl.BlockSpec((1, bt * N, 1), lambda b: (b, 0, 0)),   # mask column
            _w_spec(w1.shape), _w_spec(b1.shape),
            _w_spec(w2.shape), _w_spec(b2.shape),
            _w_spec(w3.shape), _w_spec(b3.shape),
            _w_spec(w4_row.shape), _w_spec(b4.shape),
        ],
        out_specs=pl.BlockSpec((1, bt), lambda b: (b, 0)),
        compiler_params=pltpu.CompilerParams(
            dimension_semantics=("parallel",),
            vmem_limit_bytes=32 * 1024 * 1024),
        cost_estimate=cost,
    )(x, m, w1, b1, w2, b2, w3, b3, w4_row, b4)

    return out.reshape(Bp)[:B]


def init_params(key, num_scalars, num_mixed=64, layer_width=256):
    """Deterministic init mimicking torch.nn.Linear (uniform +-1/sqrt(fan_in)).

    Weights stored as (in, out) so the kernel computes x @ W + b.
    mlp1 = [Linear(2S, layer_width), Linear(layer_width, num_mixed)] (num_hidden=1)
    mlp2 = [Linear(num_mixed, layer_width), Linear(layer_width, 1)]   (num_hidden=1)
    """
    dims = [(2 * num_scalars, layer_width),
            (layer_width, num_mixed),
            (num_mixed, layer_width),
            (layer_width, 1)]
    params = []
    for fan_in, fan_out in dims:
        key, kw, kb = jax.random.split(key, 3)
        bound = 1.0 / float(fan_in) ** 0.5
        w = jax.random.uniform(kw, (fan_in, fan_out), jnp.float32, -bound, bound)
        b = jax.random.uniform(kb, (1, fan_out), jnp.float32, -bound, bound)
        params += [w, b]
    return params


def output_pmlp_ref(scalars, mask, params):
    """Pure-JAX reference matching the PyTorch forward semantics."""
    B, N, S, _ = scalars.shape
    x = scalars.reshape(B, N, 2 * S).astype(jnp.float32)
    w1, b1, w2, b2, w3, b3, w4, b4 = params
    h = _leaky_relu(x @ w1 + b1) @ w2 + b2
    h = jnp.where(mask[..., None], h, 0.0).sum(axis=1)
    p = _leaky_relu(h @ w3 + b3) @ w4 + b4
    return p.squeeze(-1)


if __name__ == "__main__":
    key = jax.random.PRNGKey(0)
    B, N, num_scalars = 2, 8, 4   # small shapes: batch=2, atoms=8, num_scalars=4

    k_sc, k_mask, k_par = jax.random.split(key, 3)
    scalars = jax.random.normal(k_sc, (B, N, num_scalars, 2), jnp.float32)
    mask = jax.random.uniform(k_mask, (B, N)) > 0.3   # bool mask over atoms
    params = init_params(k_par, num_scalars)

    ref = output_pmlp_ref(scalars, mask, params)

    # Exact-math path (f32 matmul operands).
    out_f32 = output_pmlp(scalars, mask, params, compute_dtype=jnp.float32)
    jax.block_until_ready(out_f32)
    assert out_f32.shape == (B,)
    assert jnp.allclose(out_f32, ref, atol=1e-3, rtol=1e-3), (out_f32, ref)

    # Default bf16-operand path (f32 accumulation / activations).
    out_bf16 = output_pmlp(scalars, mask, params)
    jax.block_until_ready(out_bf16)
    assert out_bf16.shape == (B,)
    assert jnp.allclose(out_bf16, ref, atol=1e-1, rtol=1e-1), (out_bf16, ref)

    # Multi-block path (grid > 1 with batch padding) at small shapes.
    B2 = 10
    k_sc2, k_mask2 = jax.random.split(jax.random.PRNGKey(1))
    scalars2 = jax.random.normal(k_sc2, (B2, N, num_scalars, 2), jnp.float32)
    mask2 = jax.random.uniform(k_mask2, (B2, N)) > 0.3
    ref2 = output_pmlp_ref(scalars2, mask2, params)
    out2 = output_pmlp(scalars2, mask2, params, target_rows=32,
                       compute_dtype=jnp.float32)
    jax.block_until_ready(out2)
    assert out2.shape == (B2,)
    assert jnp.allclose(out2, ref2, atol=1e-3, rtol=1e-3), (out2, ref2)

    print("KERNEL_OK")
</pallas_src>

<mosaic_0001>
module attributes {stable_mosaic.version = 11 : i64} {
  func.func @output_pmlp_kernel(%arg0: i32, %arg1: memref<1x16x8xf32, #tpu.memory_space<vmem>>, %arg2: memref<1x16x1xf32, #tpu.memory_space<vmem>>, %arg3: memref<8x256xf32, #tpu.memory_space<vmem>>, %arg4: memref<1x256xf32, #tpu.memory_space<vmem>>, %arg5: memref<256x128xf32, #tpu.memory_space<vmem>>, %arg6: memref<1x128xf32, #tpu.memory_space<vmem>>, %arg7: memref<128x256xf32, #tpu.memory_space<vmem>>, %arg8: memref<1x256xf32, #tpu.memory_space<vmem>>, %arg9: memref<1x256xf32, #tpu.memory_space<vmem>>, %arg10: memref<1x1xf32, #tpu.memory_space<vmem>>, %arg11: memref<1x2xf32, #tpu.memory_space<vmem>>) attributes {dimension_semantics = [#tpu.dimension_semantics<parallel>], iteration_bounds = array<i64: 1>, scalar_prefetch = 0 : i64, scratch_operands = 0 : i64, tpu.core_type = #tpu.core_type<tc>, window_params = [{transform_indices = @transform_0, window_bounds = array<i64: 1, 16, 8>}, {transform_indices = @transform_1, window_bounds = array<i64: 1, 16, 1>}, {pipeline_mode = #tpu.pipeline_mode<synchronous>, transform_indices = @transform_2, window_bounds = array<i64: 8, 256>}, {pipeline_mode = #tpu.pipeline_mode<synchronous>, transform_indices = @transform_3, window_bounds = array<i64: 1, 256>}, {pipeline_mode = #tpu.pipeline_mode<synchronous>, transform_indices = @transform_4, window_bounds = array<i64: 256, 128>}, {pipeline_mode = #tpu.pipeline_mode<synchronous>, transform_indices = @transform_5, window_bounds = array<i64: 1, 128>}, {pipeline_mode = #tpu.pipeline_mode<synchronous>, transform_indices = @transform_6, window_bounds = array<i64: 128, 256>}, {pipeline_mode = #tpu.pipeline_mode<synchronous>, transform_indices = @transform_7, window_bounds = array<i64: 1, 256>}, {pipeline_mode = #tpu.pipeline_mode<synchronous>, transform_indices = @transform_8, window_bounds = array<i64: 1, 256>}, {pipeline_mode = #tpu.pipeline_mode<synchronous>, transform_indices = @transform_9, window_bounds = array<i64: 1, 1>}, {transform_indices = @transform_10, window_bounds = array<i64: 1, 2>}]} {
    %c0 = arith.constant 0 : index
    %c0_0 = arith.constant 0 : index
    %c0_1 = arith.constant 0 : index
    %0 = vector.load %arg1[%c0, %c0_0, %c0_1] : memref<1x16x8xf32, #tpu.memory_space<vmem>>, vector<1x16x8xf32>
    %1 = vector.shape_cast %0 : vector<1x16x8xf32> to vector<16x8xf32>
    %c0_2 = arith.constant 0 : index
    %c0_3 = arith.constant 0 : index
    %2 = vector.load %arg3[%c0_2, %c0_3] : memref<8x256xf32, #tpu.memory_space<vmem>>, vector<8x256xf32>
    %cst = arith.constant dense<0.000000e+00> : vector<16x256xf32>
    %3 = tpu.matmul %1, %2, %cst {dimension_numbers = #tpu.dot_dimension_numbers<[1], [0], [0], [1], [0, 0, 1, 1], [], []>} : vector<16x8xf32>, vector<8x256xf32>, vector<16x256xf32> -> vector<16x256xf32>
    %c0_4 = arith.constant 0 : index
    %c0_5 = arith.constant 0 : index
    %4 = vector.load %arg4[%c0_4, %c0_5] : memref<1x256xf32, #tpu.memory_space<vmem>>, vector<1x256xf32>
    %5 = vector.broadcast %4 : vector<1x256xf32> to vector<16x256xf32>
    %6 = arith.addf %3, %5 : vector<16x256xf32>
    %cst_6 = arith.constant 0.000000e+00 : f32
    %7 = vector.broadcast %cst_6 : f32 to vector<16x256xf32>
    %8 = arith.cmpf ogt, %6, %7 : vector<16x256xf32>
    %cst_7 = arith.constant 0.00999999977 : f32
    %9 = vector.broadcast %cst_7 : f32 to vector<16x256xf32>
    %10 = arith.mulf %9, %6 : vector<16x256xf32>
    %11 = arith.select %8, %6, %10 : vector<16x256xi1>, vector<16x256xf32>
    %c0_8 = arith.constant 0 : index
    %c0_9 = arith.constant 0 : index
    %12 = vector.load %arg5[%c0_8, %c0_9] : memref<256x128xf32, #tpu.memory_space<vmem>>, vector<256x128xf32>
    %cst_10 = arith.constant dense<0.000000e+00> : vector<16x128xf32>
    %13 = tpu.matmul %11, %12, %cst_10 {dimension_numbers = #tpu.dot_dimension_numbers<[1], [0], [0], [1], [0, 0, 1, 1], [], []>} : vector<16x256xf32>, vector<256x128xf32>, vector<16x128xf32> -> vector<16x128xf32>
    %c0_11 = arith.constant 0 : index
    %c0_12 = arith.constant 0 : index
    %14 = vector.load %arg6[%c0_11, %c0_12] : memref<1x128xf32, #tpu.memory_space<vmem>>, vector<1x128xf32>
    %15 = vector.broadcast %14 : vector<1x128xf32> to vector<16x128xf32>
    %16 = arith.addf %13, %15 : vector<16x128xf32>
    %c0_13 = arith.constant 0 : index
    %c0_14 = arith.constant 0 : index
    %c0_15 = arith.constant 0 : index
    %17 = vector.load %arg2[%c0_13, %c0_14, %c0_15] : memref<1x16x1xf32, #tpu.memory_space<vmem>>, vector<1x16x1xf32>
    %18 = vector.shape_cast %17 : vector<1x16x1xf32> to vector<16x1xf32>
    %cst_16 = arith.constant 0.000000e+00 : f32
    %19 = vector.broadcast %cst_16 : f32 to vector<16x1xf32>
    %20 = arith.cmpf one, %18, %19 : vector<16x1xf32>
    %cst_17 = arith.constant 0.000000e+00 : f32
    %21 = vector.shape_cast %20 : vector<16x1xi1> to vector<16x1xi1>
    %22 = vector.broadcast %21 : vector<16x1xi1> to vector<16x128xi1>
    %23 = vector.broadcast %cst_17 : f32 to vector<16x128xf32>
    %24 = arith.select %22, %16, %23 : vector<16x128xi1>, vector<16x128xf32>
    %25 = vector.shape_cast %24 : vector<16x128xf32> to vector<2x8x128xf32>
    %cst_18 = arith.constant dense<0.000000e+00> : vector<2x128xf32>
    %26 = vector.multi_reduction <add>, %25, %cst_18 [1] : vector<2x8x128xf32> to vector<2x128xf32>
    %c0_19 = arith.constant 0 : index
    %c0_20 = arith.constant 0 : index
    %27 = vector.load %arg7[%c0_19, %c0_20] : memref<128x256xf32, #tpu.memory_space<vmem>>, vector<128x256xf32>
    %cst_21 = arith.constant dense<0.000000e+00> : vector<2x256xf32>
    %28 = tpu.matmul %26, %27, %cst_21 {dimension_numbers = #tpu.dot_dimension_numbers<[1], [0], [0], [1], [0, 0, 1, 1], [], []>} : vector<2x128xf32>, vector<128x256xf32>, vector<2x256xf32> -> vector<2x256xf32>
    %c0_22 = arith.constant 0 : index
    %c0_23 = arith.constant 0 : index
    %29 = vector.load %arg8[%c0_22, %c0_23] : memref<1x256xf32, #tpu.memory_space<vmem>>, vector<1x256xf32>
    %30 = vector.broadcast %29 : vector<1x256xf32> to vector<2x256xf32>
    %31 = arith.addf %28, %30 : vector<2x256xf32>
    %cst_24 = arith.constant 0.000000e+00 : f32
    %32 = vector.broadcast %cst_24 : f32 to vector<2x256xf32>
    %33 = arith.cmpf ogt, %31, %32 : vector<2x256xf32>
    %cst_25 = arith.constant 0.00999999977 : f32
    %34 = vector.broadcast %cst_25 : f32 to vector<2x256xf32>
    %35 = arith.mulf %34, %31 : vector<2x256xf32>
    %36 = arith.select %33, %31, %35 : vector<2x256xi1>, vector<2x256xf32>
    %c0_26 = arith.constant 0 : index
    %c0_27 = arith.constant 0 : index
    %37 = vector.load %arg9[%c0_26, %c0_27] : memref<1x256xf32, #tpu.memory_space<vmem>>, vector<1x256xf32>
    %38 = vector.broadcast %37 : vector<1x256xf32> to vector<2x256xf32>
    %39 = arith.mulf %36, %38 : vector<2x256xf32>
    %cst_28 = arith.constant dense<0.000000e+00> : vector<2xf32>
    %40 = vector.multi_reduction <add>, %39, %cst_28 [1] : vector<2x256xf32> to vector<2xf32>
    %41 = vector.shape_cast %40 : vector<2xf32> to vector<1x2xf32>
    %c0_29 = arith.constant 0 : index
    %c0_30 = arith.constant 0 : index
    %42 = vector.load %arg10[%c0_29, %c0_30] : memref<1x1xf32, #tpu.memory_space<vmem>>, vector<1x1xf32>
    %43 = vector.broadcast %42 : vector<1x1xf32> to vector<1x2xf32>
    %44 = arith.addf %41, %43 : vector<1x2xf32>
    %c0_31 = arith.constant 0 : index
    %c0_32 = arith.constant 0 : index
    %45 = vector.load %arg11[%c0_31, %c0_32] : memref<1x2xf32, #tpu.memory_space<vmem>>, vector<1x2xf32>
    tpu.vector_store %arg11[%c0_31, %c0_32], %44 {strides = array<i32>} : memref<1x2xf32, #tpu.memory_space<vmem>>, vector<1x2xf32>,
    return
  }
  func.func @transform_0(%arg0: i32) -> (i32, i32, i32) {
    %c0_i32 = arith.constant 0 : i32
    %c0_i32_0 = arith.constant 0 : i32
    %c0_i32_1 = arith.constant 0 : i32
    return %arg0, %c0_i32, %c0_i32_0 : i32, i32, i32
  }
  func.func @transform_1(%arg0: i32) -> (i32, i32, i32) {
    %c0_i32 = arith.constant 0 : i32
    %c0_i32_0 = arith.constant 0 : i32
    %c0_i32_1 = arith.constant 0 : i32
    return %arg0, %c0_i32, %c0_i32_0 : i32, i32, i32
  }
  func.func @transform_2(%arg0: i32) -> (i32, i32) {
    %c0_i32 = arith.constant 0 : i32
    %c0_i32_0 = arith.constant 0 : i32
    %c0_i32_1 = arith.constant 0 : i32
    return %c0_i32, %c0_i32_0 : i32, i32
  }
  func.func @transform_3(%arg0: i32) -> (i32, i32) {
    %c0_i32 = arith.constant 0 : i32
    %c0_i32_0 = arith.constant 0 : i32
    %c0_i32_1 = arith.constant 0 : i32
    return %c0_i32, %c0_i32_0 : i32, i32
  }
  func.func @transform_4(%arg0: i32) -> (i32, i32) {
    %c0_i32 = arith.constant 0 : i32
    %c0_i32_0 = arith.constant 0 : i32
    %c0_i32_1 = arith.constant 0 : i32
    return %c0_i32, %c0_i32_0 : i32, i32
  }
  func.func @transform_5(%arg0: i32) -> (i32, i32) {
    %c0_i32 = arith.constant 0 : i32
    %c0_i32_0 = arith.constant 0 : i32
    %c0_i32_1 = arith.constant 0 : i32
    return %c0_i32, %c0_i32_0 : i32, i32
  }
  func.func @transform_6(%arg0: i32) -> (i32, i32) {
    %c0_i32 = arith.constant 0 : i32
    %c0_i32_0 = arith.constant 0 : i32
    %c0_i32_1 = arith.constant 0 : i32
    return %c0_i32, %c0_i32_0 : i32, i32
  }
  func.func @transform_7(%arg0: i32) -> (i32, i32) {
    %c0_i32 = arith.constant 0 : i32
    %c0_i32_0 = arith.constant 0 : i32
    %c0_i32_1 = arith.constant 0 : i32
    return %c0_i32, %c0_i32_0 : i32, i32
  }
  func.func @transform_8(%arg0: i32) -> (i32, i32) {
    %c0_i32 = arith.constant 0 : i32
    %c0_i32_0 = arith.constant 0 : i32
    %c0_i32_1 = arith.constant 0 : i32
    return %c0_i32, %c0_i32_0 : i32, i32
  }
  func.func @transform_9(%arg0: i32) -> (i32, i32) {
    %c0_i32 = arith.constant 0 : i32
    %c0_i32_0 = arith.constant 0 : i32
    %c0_i32_1 = arith.constant 0 : i32
    return %c0_i32, %c0_i32_0 : i32, i32
  }
  func.func @transform_10(%arg0: i32) -> (i32, i32) {
    %c0_i32 = arith.constant 0 : i32
    %c0_i32_0 = arith.constant 0 : i32
    return %arg0, %c0_i32 : i32, i32
  }
}

</mosaic_0001>

<llo_original>
// kernel: tpu_custom_call.1
$region0: #{tpu_custom_call.1}
  #allocation0 [shape = 'u32[]', space=smem, size = 0x4, offset = 0x4, fixed_abs, tag = 'smem constant byte address 0x4 - core index']
  #allocation1 [shape = 'u32[72,128]{1,0:T(1,128)}', space=vmem, size = 0x9000, scoped, tag = 'internal scratch']
  #allocation2 [shape = 'f32[1,1]{1,0:T(1,128)S(1)}', space=vmem, size = 0x200, scoped, tag = 'scoped memory for tpu_custom_call.1']
  %s0 = inlined_call_operand.vmem [shape: f32[1,16,8], index: 0, kind: input, shape index: {}]
  %s1 = inlined_call_operand.vmem [shape: f32[1,16,1], index: 1, kind: input, shape index: {}]
  %s2 = inlined_call_operand.vmem [shape: f32[8,256], index: 2, kind: input, shape index: {}]
  %s3 = inlined_call_operand.vmem [shape: f32[1,256], index: 3, kind: input, shape index: {}]
  %s4 = inlined_call_operand.hbm [shape: f32[256,128], index: 4, kind: input, shape index: {}]
  %s5 = inlined_call_operand.vmem [shape: f32[1,128], index: 5, kind: input, shape index: {}]
  %s6 = inlined_call_operand.hbm [shape: f32[128,256], index: 6, kind: input, shape index: {}]
  %s7 = inlined_call_operand.vmem [shape: f32[1,256], index: 7, kind: input, shape index: {}]
  %s8 = inlined_call_operand.vmem [shape: f32[1,256], index: 8, kind: input, shape index: {}]
  %s9 = inlined_call_operand.<no memory space> [shape: f32[1,1], index: 9, kind: input, shape index: {}]
  %s10 = inlined_call_operand.hbm [shape: f32[1,2], index: 10, kind: output, shape index: {}]
  %s11 = sld [smem:[#allocation0]]
  $region58: #{tpu_custom_call.1} parent=0
    _
  %s13 = ssub.s32 1, %s11
  %s14 = scalar_select 0, %s13, %s11
  %v15 = vstv %s9
  %16 = vst [vmem:[#allocation2] sm:$0x1] %v15
  $region1: #{tpu_custom_call.1} parent=0
    #allocation3 [shape = 'u8[131072]{0}', space=vmem, size = 0x20000, scoped, tag = 'input window, operand 4, single buffered']
    #allocation4 [shape = 's32[1]{0}', space=sflag, size = 0x4, scoped, tag = 'scoped memory for tpu_custom_call.1']
    #allocation5 [shape = 's32[1]{0}', space=sflag, size = 0x4, scoped, tag = 'scoped memory for tpu_custom_call.1']
    #allocation6 [shape = 'u8[131072]{0}', space=vmem, size = 0x20000, scoped, tag = 'input window, operand 6, single buffered']
    #allocation7 [shape = 's32[1]{0}', space=sflag, size = 0x4, scoped, tag = 'scoped memory for tpu_custom_call.1']
    #allocation8 [shape = 'u8[512]{0}', space=vmem, size = 0x400, scoped, tag = 'output window, operand 0, single buffered']
    %17 = vsyncpa [#allocation4], 0
    %18 = vsyncpa [#allocation7], 0
    %19 = vsyncpa [#allocation5], 0
    // Predicated region
    $region2: #{tpu_custom_call.1} parent=1 // pred_check
      _
    $region3: #{tpu_custom_call.1} parent=1 // pred_check_branch
      %21 = sbr.rel (0) target = $region5
    $region4: #{tpu_custom_call.1} parent=1 // pred_region
      _
    $region5: #{tpu_custom_call.1} parent=1 // pred_fallthru
      _
    // Predicated region
    $region6: #{tpu_custom_call.1} parent=1 // pred_check
      _
    $region7: #{tpu_custom_call.1} parent=1 // pred_check_branch
      %23 = sbr.rel (0) target = $region9
    $region8: #{tpu_custom_call.1} parent=1 // pred_region
      _
    $region9: #{tpu_custom_call.1} parent=1 // pred_fallthru
      _
    // Predicated region
    $region10: #{tpu_custom_call.1} parent=1 // pred_check
      _
    $region11: #{tpu_custom_call.1} parent=1 // pred_check_branch
      %25 = sbr.rel (0) target = $region13
    $region12: #{tpu_custom_call.1} parent=1 // pred_region
      _
    $region13: #{tpu_custom_call.1} parent=1 // pred_fallthru
      _
    // Predicated region
    $region14: #{tpu_custom_call.1} parent=1 // pred_check
      _
    $region15: #{tpu_custom_call.1} parent=1 // pred_check_branch
      %27 = sbr.rel (0) target = $region17
    $region16: #{tpu_custom_call.1} parent=1 // pred_region
      _
    $region17: #{tpu_custom_call.1} parent=1 // pred_fallthru
      _
    // Predicated region
    $region18: #{tpu_custom_call.1} parent=1 // pred_check
      _
    $region19: #{tpu_custom_call.1} parent=1 // pred_check_branch
      %29 = sbr.rel (0) target = $region21
    $region20: #{tpu_custom_call.1} parent=1 // pred_region
      %31 = vsyncadd [#allocation4], 0
      %s32 = sshll.u32 %s4, 4
      %s33 = int_to_ptr.hbm [resolvable:$true] %s32
      %s34 = sshll.u32 [#allocation3], 4
      %s35 = int_to_ptr.vmem [resolvable:$true] %s34
      %40 = dma.hbm_to_vmem [thread:$0]  %s33, 4096, %s35, [#allocation4], 128, 128, 8
    $region21: #{tpu_custom_call.1} parent=1 // pred_fallthru
      _
    // Predicated region
    $region22: #{tpu_custom_call.1} parent=1 // pred_check
      _
    $region23: #{tpu_custom_call.1} parent=1 // pred_check_branch
      %42 = sbr.rel (0) target = $region25
    $region24: #{tpu_custom_call.1} parent=1 // pred_region
      _
    $region25: #{tpu_custom_call.1} parent=1 // pred_fallthru
      _
    // Predicated region
    $region26: #{tpu_custom_call.1} parent=1 // pred_check
      _
    $region27: #{tpu_custom_call.1} parent=1 // pred_check_branch
      %44 = sbr.rel (0) target = $region29
    $region28: #{tpu_custom_call.1} parent=1 // pred_region
      %46 = vsyncadd [#allocation7], 0
      %s47 = sshll.u32 %s6, 4
      %s48 = int_to_ptr.hbm [resolvable:$true] %s47
      %s49 = sshll.u32 [#allocation6], 4
      %s50 = int_to_ptr.vmem [resolvable:$true] %s49
      %55 = dma.hbm_to_vmem [thread:$0]  %s48, 4096, %s50, [#allocation7], 256, 256, 16
    $region29: #{tpu_custom_call.1} parent=1 // pred_fallthru
      _
    // Predicated region
    $region30: #{tpu_custom_call.1} parent=1 // pred_check
      _
    $region31: #{tpu_custom_call.1} parent=1 // pred_check_branch
      %57 = sbr.rel (0) target = $region33
    $region32: #{tpu_custom_call.1} parent=1 // pred_region
      _
    $region33: #{tpu_custom_call.1} parent=1 // pred_fallthru
      _
    // Predicated region
    $region34: #{tpu_custom_call.1} parent=1 // pred_check
      _
    $region35: #{tpu_custom_call.1} parent=1 // pred_check_branch
      %59 = sbr.rel (0) target = $region37
    $region36: #{tpu_custom_call.1} parent=1 // pred_region
      _
    $region37: #{tpu_custom_call.1} parent=1 // pred_fallthru
      _
    // Predicated region
    $region38: #{tpu_custom_call.1} parent=1 // pred_check
      _
    $region39: #{tpu_custom_call.1} parent=1 // pred_check_branch
      %61 = sbr.rel (0) target = $region41
    $region40: #{tpu_custom_call.1} parent=1 // pred_region
      _
    $region41: #{tpu_custom_call.1} parent=1 // pred_fallthru
      _
    // Predicated region
    $region42: #{tpu_custom_call.1} parent=1 // pred_check
      _
    $region43: #{tpu_custom_call.1} parent=1 // pred_check_branch
      %63 = sbr.rel (0) target = $region45
    $region44: #{tpu_custom_call.1} parent=1 // pred_region
      %65 = dma.done [#allocation4], 4096
    $region45: #{tpu_custom_call.1} parent=1 // pred_fallthru
      _
    // Predicated region
    $region46: #{tpu_custom_call.1} parent=1 // pred_check
      _
    $region47: #{tpu_custom_call.1} parent=1 // pred_check_branch
      %67 = sbr.rel (0) target = $region49
    $region48: #{tpu_custom_call.1} parent=1 // pred_region
      %69 = dma.done [#allocation7], 4096
    $region49: #{tpu_custom_call.1} parent=1 // pred_fallthru
      _
    %v70 = vld [vmem:[%s0] sm:$0xff]
    %v71 = vld [vmem:[%s0 + $0x8] sm:$0xff]
    %v72 = vld [vmem:[%s2] sm:$0xff]
    %v73 = vld [vmem:[%s2 + $0x8] sm:$0xff]
    %v74 = vld [vmem:[%s3] sm:$0x3]
    %v76 = vperm.slane %v74, 0
    %v77 = vperm.slane %v74, 1
    %vm80 = vcmask 64512
    %v82 = vsel %vm80, %v70, 0
    %v85 = vsel %vm80, %v71, 0
    %87 = vmatpush.msra.mxu0 0.0
    %88 = vmatpush.msra.mxu0 0.0
    %89 = vmatpush.msra.mxu0 0.0
    %90 = vmatpush.msra.mxu0 0.0
    %91 = vmatpush.msra.mxu0 0.0
    %92 = vmatpush.msra.mxu0 0.0
    %93 = vmatpush.msra.mxu0 0.0
    %94 = vmatpush.msra.mxu0 0.0
    %95 = vmatpush.msra.mxu0 0.0
    %96 = vmatpush.msra.mxu0 0.0
    %97 = vmatpush.msra.mxu0 0.0
    %98 = vmatpush.msra.mxu0 0.0
    %99 = vmatpush.msra.mxu0 0.0
    %100 = vmatpush.msra.mxu0 0.0
    %101 = vmatpush.msra.mxu0 0.0
    %102 = vmatpush.msra.mxu0 %v72
    %103 = vmatmul.f32.gmra.mxu0 %v82
    %v104 = vpop.f32.mrf.mxu0
    %v105 = vadd.f32 %v76, %v104
    %106 = vmatmul.f32.gmra.mxu0 %v85
    %v107 = vpop.f32.mrf.mxu0
    %v108 = vadd.f32 %v76, %v107
    %109 = vdwg.mxu0
    %110 = vmatpush.msra.mxu0 0.0
    %111 = vmatpush.msra.mxu0 0.0
    %112 = vmatpush.msra.mxu0 0.0
    %113 = vmatpush.msra.mxu0 0.0
    %114 = vmatpush.msra.mxu0 0.0
    %115 = vmatpush.msra.mxu0 0.0
    %116 = vmatpush.msra.mxu0 0.0
    %117 = vmatpush.msra.mxu0 0.0
    %118 = vmatpush.msra.mxu0 0.0
    %119 = vmatpush.msra.mxu0 0.0
    %120 = vmatpush.msra.mxu0 0.0
    %121 = vmatpush.msra.mxu0 0.0
    %122 = vmatpush.msra.mxu0 0.0
    %123 = vmatpush.msra.mxu0 0.0
    %124 = vmatpush.msra.mxu0 0.0
    %125 = vmatpush.msra.mxu0 %v73
    %126 = vmatmul.f32.gmra.mxu0 %v82
    %v127 = vpop.f32.mrf.mxu0
    %v128 = vadd.f32 %v77, %v127
    %129 = vmatmul.f32.gmra.mxu0 %v85
    %v130 = vpop.f32.mrf.mxu0
    %v131 = vadd.f32 %v77, %v130
    %132 = vdwg.mxu0
    %vm133 = vcmp.gt.f32.partialorder %v105, 0.0
    %vm134 = vcmp.gt.f32.partialorder %v128, 0.0
    %vm135 = vcmp.gt.f32.partialorder %v108, 0.0
    %vm136 = vcmp.gt.f32.partialorder %v131, 0.0
    %v137 = vmul.f32 %v105, 0.01
    %v138 = vmul.f32 %v128, 0.01
    %v139 = vmul.f32 %v108, 0.01
    %v140 = vmul.f32 %v131, 0.01
    %v141 = vsel %vm133, %v105, %v137
    %v142 = vsel %vm134, %v128, %v138
    %v143 = vsel %vm135, %v108, %v139
    %v144 = vsel %vm136, %v131, %v140
    %v145 = vld [vmem:[#allocation3] sm:$0xff]
    %v146 = vld [vmem:[#allocation3 + $0x8] sm:$0xff]
    %v147 = vld [vmem:[#allocation3 + $0x10] sm:$0xff]
    %v148 = vld [vmem:[#allocation3 + $0x18] sm:$0xff]
    %v149 = vld [vmem:[#allocation3 + $0x20] sm:$0xff]
    %v150 = vld [vmem:[#allocation3 + $0x28] sm:$0xff]
    %v151 = vld [vmem:[#allocation3 + $0x30] sm:$0xff]
    %v152 = vld [vmem:[#allocation3 + $0x38] sm:$0xff]
    %v153 = vld [vmem:[#allocation3 + $0x40] sm:$0xff]
    %v154 = vld [vmem:[#allocation3 + $0x48] sm:$0xff]
    %v155 = vld [vmem:[#allocation3 + $0x50] sm:$0xff]
    %v156 = vld [vmem:[#allocation3 + $0x58] sm:$0xff]
    %v157 = vld [vmem:[#allocation3 + $0x60] sm:$0xff]
    %v158 = vld [vmem:[#allocation3 + $0x68] sm:$0xff]
    %v159 = vld [vmem:[#allocation3 + $0x70] sm:$0xff]
    %v160 = vld [vmem:[#allocation3 + $0x78] sm:$0xff]
    %v161 = vld [vmem:[#allocation3 + $0x80] sm:$0xff]
    %v162 = vld [vmem:[#allocation3 + $0x88] sm:$0xff]
    %v163 = vld [vmem:[#allocation3 + $0x90] sm:$0xff]
    %v164 = vld [vmem:[#allocation3 + $0x98] sm:$0xff]
    %v165 = vld [vmem:[#allocation3 + $0xa0] sm:$0xff]
    %v166 = vld [vmem:[#allocation3 + $0xa8] sm:$0xff]
    %v167 = vld [vmem:[#allocation3 + $0xb0] sm:$0xff]
    %v168 = vld [vmem:[#allocation3 + $0xb8] sm:$0xff]
    %v169 = vld [vmem:[#allocation3 + $0xc0] sm:$0xff]
    %v170 = vld [vmem:[#allocation3 + $0xc8] sm:$0xff]
    %v171 = vld [vmem:[#allocation3 + $0xd0] sm:$0xff]
    %v172 = vld [vmem:[#allocation3 + $0xd8] sm:$0xff]
    %v173 = vld [vmem:[#allocation3 + $0xe0] sm:$0xff]
    %v174 = vld [vmem:[#allocation3 + $0xe8] sm:$0xff]
    %v175 = vld [vmem:[#allocation3 + $0xf0] sm:$0xff]
    %v176 = vld [vmem:[#allocation3 + $0xf8] sm:$0xff]
    %v177 = vld [vmem:[%s5] sm:$0x1]
    %v179 = vperm.slane %v177, 0
    %181 = vmatpush.msra.mxu0 %v160
    %182 = vmatpush.msra.mxu0 %v159
    %183 = vmatpush.msra.mxu0 %v158
    %184 = vmatpush.msra.mxu0 %v157
    %185 = vmatpush.msra.mxu0 %v156
    %186 = vmatpush.msra.mxu0 %v155
    %187 = vmatpush.msra.mxu0 %v154
    %188 = vmatpush.msra.mxu0 %v153
    %189 = vmatpush.msra.mxu0 %v152
    %190 = vmatpush.msra.mxu0 %v151
    %191 = vmatpush.msra.mxu0 %v150
    %192 = vmatpush.msra.mxu0 %v149
    %193 = vmatpush.msra.mxu0 %v148
    %194 = vmatpush.msra.mxu0 %v147
    %195 = vmatpush.msra.mxu0 %v146
    %196 = vmatpush.msra.mxu0 %v145
    %197 = vmatmul.f32.gmra.mxu0 %v141
    %v198 = vpop.f32.mrf.mxu0
    %v199 = vadd.f32 %v179, %v198
    %200 = vmatmul.f32.gmra.mxu0 %v143
    %v201 = vpop.f32.mrf.mxu0
    %v202 = vadd.f32 %v179, %v201
    %203 = vdwg.mxu0
    %204 = vmatpush.msra.mxu0 %v176
    %205 = vmatpush.msra.mxu0 %v175
    %206 = vmatpush.msra.mxu0 %v174
    %207 = vmatpush.msra.mxu0 %v173
    %208 = vmatpush.msra.mxu0 %v172
    %209 = vmatpush.msra.mxu0 %v171
    %210 = vmatpush.msra.mxu0 %v170
    %211 = vmatpush.msra.mxu0 %v169
    %212 = vmatpush.msra.mxu0 %v168
    %213 = vmatpush.msra.mxu0 %v167
    %214 = vmatpush.msra.mxu0 %v166
    %215 = vmatpush.msra.mxu0 %v165
    %216 = vmatpush.msra.mxu0 %v164
    %217 = vmatpush.msra.mxu0 %v163
    %218 = vmatpush.msra.mxu0 %v162
    %219 = vmatpush.msra.mxu0 %v161
    %220 = vmatmul.f32.gmra.mxu0 %v142
    %v221 = vpop.f32.mrf.mxu0
    %v222 = vadd.f32 %v199, %v221
    %223 = vmatmul.f32.gmra.mxu0 %v144
    %v224 = vpop.f32.mrf.mxu0
    %v225 = vadd.f32 %v202, %v224
    %226 = vdwg.mxu0
    %v227 = vld [vmem:[%s1] sm:$0xff]
    %v228 = vld [vmem:[%s1 + $0x8] sm:$0xff]
    %vm229 = vcmp.ne.f32.partialorder %v227, 0.0
    %vm230 = vcmp.ne.f32.partialorder %v228, 0.0
    %v231 = vsel %vm229, 1, 0
    %v232 = vsel %vm230, 1, 0
    %233 = vset.pattern.permute.xlu0 0
    %234 = vperm.xlu0 %233, %v231
    %v235 = vpop.permute.xlu0 %234
    %236 = vset.pattern.permute.xlu0 0
    %237 = vperm.xlu0 %236, %v232
    %v238 = vpop.permute.xlu0 %237
    %vm239 = vcmp.eq.s32.totalorder %v235, 1
    %vm240 = vcmp.eq.s32.totalorder %v238, 1
    %v241 = vsel %vm239, %v222, 0.0
    %v242 = vsel %vm240, %v225, 0.0
    %v243 = vrot.slane %v241, 4
    %v244 = vadd.f32 %v241, %v243
    %v245 = vrot.slane %v244, 2
    %v246 = vadd.f32 %v244, %v245
    %v247 = vrot.slane %v246, 1
    %v248 = vadd.f32 %v246, %v247
    %v249 = vrot.slane %v242, 4
    %v250 = vadd.f32 %v242, %v249
    %v251 = vrot.slane %v250, 2
    %v252 = vadd.f32 %v250, %v251
    %v253 = vrot.slane %v252, 1
    %v254 = vadd.f32 %v252, %v253
    %v255 = vld [vmem:[#allocation6] sm:$0xff]
    %v256 = vld [vmem:[#allocation6 + $0x8] sm:$0xff]
    %v257 = vld [vmem:[#allocation6 + $0x10] sm:$0xff]
    %v258 = vld [vmem:[#allocation6 + $0x18] sm:$0xff]
    %v259 = vld [vmem:[#allocation6 + $0x20] sm:$0xff]
    %v260 = vld [vmem:[#allocation6 + $0x28] sm:$0xff]
    %v261 = vld [vmem:[#allocation6 + $0x30] sm:$0xff]
    %v262 = vld [vmem:[#allocation6 + $0x38] sm:$0xff]
    %v263 = vld [vmem:[#allocation6 + $0x40] sm:$0xff]
    %v264 = vld [vmem:[#allocation6 + $0x48] sm:$0xff]
    %v265 = vld [vmem:[#allocation6 + $0x50] sm:$0xff]
    %v266 = vld [vmem:[#allocation6 + $0x58] sm:$0xff]
    %v267 = vld [vmem:[#allocation6 + $0x60] sm:$0xff]
    %v268 = vld [vmem:[#allocation6 + $0x68] sm:$0xff]
    %v269 = vld [vmem:[#allocation6 + $0x70] sm:$0xff]
    %v270 = vld [vmem:[#allocation6 + $0x78] sm:$0xff]
    %v271 = vld [vmem:[#allocation6 + $0x80] sm:$0xff]
    %v272 = vld [vmem:[#allocation6 + $0x88] sm:$0xff]
    %v273 = vld [vmem:[#allocation6 + $0x90] sm:$0xff]
    %v274 = vld [vmem:[#allocation6 + $0x98] sm:$0xff]
    %v275 = vld [vmem:[#allocation6 + $0xa0] sm:$0xff]
    %v276 = vld [vmem:[#allocation6 + $0xa8] sm:$0xff]
    %v277 = vld [vmem:[#allocation6 + $0xb0] sm:$0xff]
    %v278 = vld [vmem:[#allocation6 + $0xb8] sm:$0xff]
    %v279 = vld [vmem:[#allocation6 + $0xc0] sm:$0xff]
    %v280 = vld [vmem:[#allocation6 + $0xc8] sm:$0xff]
    %v281 = vld [vmem:[#allocation6 + $0xd0] sm:$0xff]
    %v282 = vld [vmem:[#allocation6 + $0xd8] sm:$0xff]
    %v283 = vld [vmem:[#allocation6 + $0xe0] sm:$0xff]
    %v284 = vld [vmem:[#allocation6 + $0xe8] sm:$0xff]
    %v285 = vld [vmem:[#allocation6 + $0xf0] sm:$0xff]
    %v286 = vld [vmem:[#allocation6 + $0xf8] sm:$0xff]
    %v287 = vld [vmem:[%s7] sm:$0x3]
    %v289 = vperm.slane %v287, 0
    %v290 = vperm.slane %v287, 1
    %vm295 = vcmask 1041409
    %v296 = vsel %vm295, %v254, %v248
    %298 = vmatpush.msra.mxu0 %v285
    %299 = vmatpush.msra.mxu0 %v283
    %300 = vmatpush.msra.mxu0 %v281
    %301 = vmatpush.msra.mxu0 %v279
    %302 = vmatpush.msra.mxu0 %v277
    %303 = vmatpush.msra.mxu0 %v275
    %304 = vmatpush.msra.mxu0 %v273
    %305 = vmatpush.msra.mxu0 %v271
    %306 = vmatpush.msra.mxu0 %v269
    %307 = vmatpush.msra.mxu0 %v267
    %308 = vmatpush.msra.mxu0 %v265
    %309 = vmatpush.msra.mxu0 %v263
    %310 = vmatpush.msra.mxu0 %v261
    %311 = vmatpush.msra.mxu0 %v259
    %312 = vmatpush.msra.mxu0 %v257
    %313 = vmatpush.msra.mxu0 %v255
    %314 = vmatmul.f32.gmra.mxu0 %v296
    %v315 = vpop.f32.mrf.mxu0
    %v316 = vadd.f32 %v289, %v315
    %317 = vdwg.mxu0
    %318 = vmatpush.msra.mxu0 %v286
    %319 = vmatpush.msra.mxu0 %v284
    %320 = vmatpush.msra.mxu0 %v282
    %321 = vmatpush.msra.mxu0 %v280
    %322 = vmatpush.msra.mxu0 %v278
    %323 = vmatpush.msra.mxu0 %v276
    %324 = vmatpush.msra.mxu0 %v274
    %325 = vmatpush.msra.mxu0 %v272
    %326 = vmatpush.msra.mxu0 %v270
    %327 = vmatpush.msra.mxu0 %v268
    %328 = vmatpush.msra.mxu0 %v266
    %329 = vmatpush.msra.mxu0 %v264
    %330 = vmatpush.msra.mxu0 %v262
    %331 = vmatpush.msra.mxu0 %v260
    %332 = vmatpush.msra.mxu0 %v258
    %333 = vmatpush.msra.mxu0 %v256
    %334 = vmatmul.f32.gmra.mxu0 %v296
    %v335 = vpop.f32.mrf.mxu0
    %v336 = vadd.f32 %v290, %v335
    %337 = vdwg.mxu0
    %vm338 = vcmp.gt.f32.partialorder %v316, 0.0
    %vm339 = vcmp.gt.f32.partialorder %v336, 0.0
    %v340 = vmul.f32 %v316, 0.01
    %v341 = vmul.f32 %v336, 0.01
    %v342 = vsel %vm338, %v316, %v340
    %v343 = vsel %vm339, %v336, %v341
    %v344 = vld [vmem:[%s8] sm:$0x3]
    %v346 = vperm.slane %v344, 0
    %v347 = vperm.slane %v344, 1
    %v350 = vmul.f32 %v342, %v346
    %v351 = vmul.f32 %v343, %v347
    %vm352 = vcmask 1041408
    %v353 = vsel %vm352, %v350, 0.0
    %v354 = vsel %vm352, %v351, 0.0
    %v355 = vadd.f32 %v353, %v354
    %356 = vadd.xlane.f32.xlu0 %v355
    %v357 = vpop.xlane.xlu0 %356
    %v358 = vld [vmem:[#allocation2] sm:$0x1]
    %360 = vset.pattern.permute.xlu0 0
    %361 = vperm.xlu0 %360, %v358
    %v362 = vpop.permute.xlu0 %361
    %v364 = vperm.slane %v362, 0
    %v365 = vadd.f32 %v357, %v364
    %v367 = vlaneseq
    %v368 = vand.u32 %v367, 127
    %v369 = vperm.slane %v365, %v368
    %vm371 = vcmask 8192
    %372 = vst.msk [vmem:[#allocation8] sm:$0x1] %vm371, %v369
    // Predicated region
    $region50: #{tpu_custom_call.1} parent=1 // pred_check
      _
    $region51: #{tpu_custom_call.1} parent=1 // pred_check_branch
      %374 = sbr.rel (0) target = $region53
    $region52: #{tpu_custom_call.1} parent=1 // pred_region
      %376 = vsyncadd [#allocation5], 0
      %s378 = sshll.u32 [#allocation8], 4
      %s379 = int_to_ptr.vmem [resolvable:$true] %s378
      %s380 = sshll.u32 %s10, 4
      %s381 = int_to_ptr.hbm [resolvable:$true] %s380
      %383 = dma.vmem_to_hbm [thread:$0]  %s379, 16, %s381, [#allocation5]
    $region53: #{tpu_custom_call.1} parent=1 // pred_fallthru
      _
    // Predicated region
    $region54: #{tpu_custom_call.1} parent=1 // pred_check
      _
    $region55: #{tpu_custom_call.1} parent=1 // pred_check_branch
      %385 = sbr.rel (0) target = $region57
    $region56: #{tpu_custom_call.1} parent=1 // pred_region
      %387 = dma.done [#allocation5], 16
    $region57: #{tpu_custom_call.1} parent=1 // pred_fallthru
      _
    %388 = vsyncpa [#allocation4], 1
    %389 = vsyncpa [#allocation7], 1
    %390 = vsyncpa [#allocation5], 1

</llo_original>
